<compile_context>
chip_gen: v6e
topology: v6e:2x2x1
jax: 0.10.0
libtpu: 0.0.40
codegen_flags: <defaults>
</compile_context>

<pallas_src>
import jax
import jax.numpy as jnp
from jax.experimental import pallas as pl
from jax.experimental.pallas import tpu as pltpu

# ---------------- model hyper-parameters (small, consistent with the module) --
VOCAB_SIZE   = 50
EMBED_DIM    = 32
CLASS_NUM    = 4
KERNEL_SIZES = (3, 4, 5)
NUM_CHANNELS = 16
BATCH        = 2
SEQ_LEN      = 16

LANE    = 128     # lane-dense padded feature / logit width
SUBLANE = 8
NEG_INF = -1e30   # additive mask value for invalid (position, channel) slots


# =============================================================================
# One-time parameter packing (hoisted out of the per-call jit path).
# =============================================================================
def pack_params(embed_table, w3, b3, w4, b4, w5, b5, fc_w, fc_b, seq_len):
    """Packs all learned parameters into (table_ext, slab).

    slab layout (rows, all 128 lanes wide, bf16):
      [0            , kmax*E)            conv weight bank (kernel g in cols g*C:(g+1)*C)
      [kmax*E       , kmax*E + 128)      FC weight, fc bias folded into row `bias_col`
      [kmax*E + 128 , kmax*E + 128+Lp)   additive bias-or--1e30 mask (Lp = lout_pad)
    """
    vocab, embed_dim = embed_table.shape
    channels = w3.shape[-1]
    ncls = fc_w.shape[-1]
    ks = KERNEL_SIZES
    kmax, kmin = max(ks), min(ks)
    lout_pad = pl.cdiv(seq_len - kmin + 1, SUBLANE) * SUBLANE
    k_e = kmax * embed_dim
    c3 = channels * len(ks)
    c3_pad = LANE
    bias_col = c3  # virtual feature column that carries a constant 1.0 -> FC bias

    # Embedding table with one extra all-zero row for out-of-window padding ids.
    table_ext = jnp.concatenate(
        [embed_table.astype(jnp.float32), jnp.zeros((1, embed_dim), jnp.float32)],
        axis=0)

    # Conv weight bank + additive bias/validity mask.
    wbig = jnp.zeros((k_e, c3_pad), jnp.float32)
    mask = jnp.full((lout_pad, c3_pad), NEG_INF, jnp.float32)
    for g, (w, b, k) in enumerate(zip((w3, w4, w5), (b3, b4, b5), ks)):
        wbig = wbig.at[:k * embed_dim, g * channels:(g + 1) * channels].set(
            w.reshape(k * embed_dim, channels))
        valid = seq_len - k + 1
        mask = mask.at[:valid, g * channels:(g + 1) * channels].set(
            b.reshape(1, channels))
    # Virtual feature: relu(0 + 1.0) = 1.0 survives max-pool -> pooled[:, bias_col] = 1.
    mask = mask.at[0, bias_col].set(1.0)

    # FC weight with the fc bias folded into the virtual-1.0 row.
    fcw = jnp.zeros((c3_pad, c3_pad), jnp.float32)
    fcw = fcw.at[:c3, :ncls].set(fc_w)
    fcw = fcw.at[bias_col, :ncls].set(fc_b.reshape(ncls))

    slab = jnp.concatenate([wbig, fcw, mask], axis=0).astype(jnp.bfloat16)
    return table_ext, slab


# =============================================================================
# Fused Pallas kernel: conv-bank matmul + bias/mask/ReLU + max-pool + FC.
# =============================================================================
def _make_kernel(batch, b_pad, lout_pad, k_e, c3_pad):
    def cnn_text_kernel(patch_ref,   # (B*lout_pad, kmax*E)   bf16 im2col patches
                        slab_ref,    # (kmax*E + 128 + lout_pad, 128) bf16 packed weights
                        out_ref):    # (b_pad, 128)            f32 padded logits
        w_conv = slab_ref[0:k_e, :]                                   # (k_e, 128) bf16
        w_fc   = slab_ref[k_e:k_e + c3_pad, :]                        # (128, 128) bf16
        mask   = slab_ref[k_e + c3_pad:k_e + c3_pad + lout_pad, :]    # (Lp, 128)
        mask   = mask.astype(jnp.float32)

        # Whole conv bank as one MXU matmul, f32 accumulation.
        conv = jnp.dot(patch_ref[...], w_conv,
                       preferred_element_type=jnp.float32)            # (B*Lp, 128)
        conv = conv.reshape(batch, lout_pad, c3_pad)

        # bias (valid slots) / -1e30 (invalid slots) additive mask, then ReLU.
        # Zeros from masked slots are max-pool neutral because ReLU outputs >= 0.
        act = jnp.maximum(conv + mask[None], 0.0)                      # f32

        # Max-pool over time (sublane reduce).
        pooled = jnp.max(act, axis=1)                                  # (B, 128) f32

        # Pad rows to a full sublane tile so the FC matmul/store are full-tile.
        pad_rows = b_pad - batch
        if pad_rows:
            pooled = jnp.concatenate(
                [pooled, jnp.zeros((pad_rows, c3_pad), jnp.float32)], axis=0)

        # Final linear layer; fc bias arrives via pooled[:, bias_col] == 1.0.
        logits = jnp.dot(pooled.astype(w_fc.dtype), w_fc,
                         preferred_element_type=jnp.float32)           # (b_pad, 128)
        out_ref[...] = logits.astype(out_ref.dtype)

    return cnn_text_kernel


# =============================================================================
# Per-call forward: token gather/im2col (XLA) + fused Pallas kernel.
# =============================================================================
def cnn_text_forward(table_ext, slab, tokens):
    """tokens: (B, L) int32 -> (B, CLASS_NUM) f32 logits (eval mode)."""
    batch, seq_len = tokens.shape
    embed_dim = table_ext.shape[1]
    zero_row = table_ext.shape[0] - 1            # all-zero padding row
    ks = KERNEL_SIZES
    kmax, kmin = max(ks), min(ks)
    lout_pad = pl.cdiv(seq_len - kmin + 1, SUBLANE) * SUBLANE
    k_e = kmax * embed_dim
    b_pad = pl.cdiv(batch, SUBLANE) * SUBLANE

    # Embedding lookup + im2col unfold as ONE fused gather -> bf16 patches.
    pad_len = lout_pad + kmax - 1
    tok_pad = jnp.full((batch, pad_len), zero_row, jnp.int32)
    tok_pad = tok_pad.at[:, :seq_len].set(tokens.astype(jnp.int32))
    win = jnp.arange(lout_pad)[:, None] + jnp.arange(kmax)[None, :]   # (Lp, kmax)
    patch_ids = tok_pad[:, win]                                       # (B, Lp, kmax)
    patches = table_ext[patch_ids].reshape(batch * lout_pad, k_e)
    patches = patches.astype(jnp.bfloat16)

    kernel = _make_kernel(batch, b_pad, lout_pad, k_e, LANE)
    vmem = pl.BlockSpec(memory_space=pltpu.MemorySpace.VMEM)
    logits_pad = pl.pallas_call(
        kernel,
        out_shape=jax.ShapeDtypeStruct((b_pad, LANE), jnp.float32),
        in_specs=[vmem, vmem],
        out_specs=vmem,
    )(patches, slab)
    return logits_pad[:batch, :CLASS_NUM]


cnn_text_forward = jax.jit(cnn_text_forward)


# =============================================================================
# Pure-JAX f32 reference of the PyTorch forward (eval mode).
# =============================================================================
def reference_forward(emb, w3, b3, w4, b4, w5, b5, fc_w, fc_b):
    pooled = []
    for w, bias, k in ((w3, b3, 3), (w4, b4, 4), (w5, b5, 5)):
        lout = emb.shape[1] - k + 1
        acc = jnp.zeros((emb.shape[0], lout, w.shape[-1]), jnp.float32)
        for j in range(k):
            acc = acc + jnp.einsum('ble,ec->blc', emb[:, j:j + lout, :], w[j])
        conv = jax.nn.relu(acc + bias[None])     # (B, Lout, C)
        pooled.append(jnp.max(conv, axis=1))     # (B, C)
    feat = jnp.concatenate(pooled, axis=1)
    return feat @ fc_w + fc_b


if __name__ == "__main__":
    key = jax.random.PRNGKey(0)
    keys = jax.random.split(key, 10)

    # Deterministic synthetic parameters (shapes implied by CNN_Text.__init__).
    embed_table = 0.1 * jax.random.normal(keys[0], (VOCAB_SIZE, EMBED_DIM), jnp.float32)
    w3 = 0.1 * jax.random.normal(keys[1], (3, EMBED_DIM, NUM_CHANNELS), jnp.float32)
    b3 = 0.1 * jax.random.normal(keys[2], (1, NUM_CHANNELS), jnp.float32)
    w4 = 0.1 * jax.random.normal(keys[3], (4, EMBED_DIM, NUM_CHANNELS), jnp.float32)
    b4 = 0.1 * jax.random.normal(keys[4], (1, NUM_CHANNELS), jnp.float32)
    w5 = 0.1 * jax.random.normal(keys[5], (5, EMBED_DIM, NUM_CHANNELS), jnp.float32)
    b5 = 0.1 * jax.random.normal(keys[6], (1, NUM_CHANNELS), jnp.float32)
    fc_w = 0.1 * jax.random.normal(
        keys[7], (NUM_CHANNELS * len(KERNEL_SIZES), CLASS_NUM), jnp.float32)
    fc_b = 0.1 * jax.random.normal(keys[8], (1, CLASS_NUM), jnp.float32)

    tokens = jax.random.randint(keys[9], (BATCH, SEQ_LEN), 0, VOCAB_SIZE)

    # Pack parameters once at setup (outside the per-call jit path).
    table_ext, slab = pack_params(embed_table, w3, b3, w4, b4, w5, b5,
                                  fc_w, fc_b, SEQ_LEN)

    logits = cnn_text_forward(table_ext, slab, tokens)
    logits = jax.block_until_ready(logits)

    emb = jnp.take(embed_table, tokens, axis=0)              # reference-only gather
    ref = reference_forward(emb, w3, b3, w4, b4, w5, b5, fc_w, fc_b)
    assert logits.shape == (BATCH, CLASS_NUM)
    # bf16 MXU operands -> loosened tolerance vs the f32 reference.
    assert jnp.allclose(logits, ref, atol=2e-2, rtol=2e-2), (
        f"max abs err {jnp.max(jnp.abs(logits - ref))}")

    print("KERNEL_OK")
</pallas_src>

<mosaic_0001>
module attributes {stable_mosaic.version = 11 : i64} {
  func.func @cnn_text_kernel(%arg0: memref<32x160xbf16, #tpu.memory_space<vmem>>, %arg1: memref<304x128xbf16, #tpu.memory_space<vmem>>, %arg2: memref<8x128xf32, #tpu.memory_space<vmem>>) attributes {dimension_semantics = [], scalar_prefetch = 0 : i64, scratch_operands = 0 : i64, tpu.core_type = #tpu.core_type<tc>} {
    %c0 = arith.constant 0 : index
    %c0_0 = arith.constant 0 : index
    %0 = vector.load %arg1[%c0, %c0_0] : memref<304x128xbf16, #tpu.memory_space<vmem>>, vector<160x128xbf16>
    %c160 = arith.constant 160 : index
    %c0_1 = arith.constant 0 : index
    %1 = vector.load %arg1[%c160, %c0_1] : memref<304x128xbf16, #tpu.memory_space<vmem>>, vector<128x128xbf16>
    %c288 = arith.constant 288 : index
    %c0_2 = arith.constant 0 : index
    %2 = vector.load %arg1[%c288, %c0_2] : memref<304x128xbf16, #tpu.memory_space<vmem>>, vector<16x128xbf16>
    %3 = arith.extf %2 : vector<16x128xbf16> to vector<16x128xf32>
    %c0_3 = arith.constant 0 : index
    %c0_4 = arith.constant 0 : index
    %4 = vector.load %arg0[%c0_3, %c0_4] : memref<32x160xbf16, #tpu.memory_space<vmem>>, vector<32x160xbf16>
    %cst = arith.constant dense<0.000000e+00> : vector<32x128xf32>
    %5 = tpu.matmul %4, %0, %cst {dimension_numbers = #tpu.dot_dimension_numbers<[1], [0], [0], [1], [0, 0, 1, 1], [], []>} : vector<32x160xbf16>, vector<160x128xbf16>, vector<32x128xf32> -> vector<32x128xf32>
    %6 = vector.shape_cast %5 : vector<32x128xf32> to vector<2x16x128xf32>
    %7 = vector.shape_cast %3 : vector<16x128xf32> to vector<1x16x128xf32>
    %8 = vector.broadcast %7 : vector<1x16x128xf32> to vector<2x16x128xf32>
    %9 = arith.addf %6, %8 : vector<2x16x128xf32>
    %cst_5 = arith.constant 0.000000e+00 : f32
    %10 = vector.broadcast %cst_5 : f32 to vector<2x16x128xf32>
    %11 = arith.maximumf %9, %10 : vector<2x16x128xf32>
    %cst_6 = arith.constant dense<0xFF800000> : vector<2x128xf32>
    %12 = vector.multi_reduction <maximumf>, %11, %cst_6 [1] : vector<2x16x128xf32> to vector<2x128xf32>
    %cst_7 = arith.constant 0.000000e+00 : f32
    %13 = vector.broadcast %cst_7 : f32 to vector<6x128xf32>
    %14 = tpu.concatenate %12, %13 in 0 : vector<2x128xf32>, vector<6x128xf32> -> vector<8x128xf32>
    %15 = arith.truncf %14 : vector<8x128xf32> to vector<8x128xbf16>
    %cst_8 = arith.constant dense<0.000000e+00> : vector<8x128xf32>
    %16 = tpu.matmul %15, %1, %cst_8 {dimension_numbers = #tpu.dot_dimension_numbers<[1], [0], [0], [1], [0, 0, 1, 1], [], []>} : vector<8x128xbf16>, vector<128x128xbf16>, vector<8x128xf32> -> vector<8x128xf32>
    %c0_9 = arith.constant 0 : index
    %c0_10 = arith.constant 0 : index
    %17 = vector.load %arg2[%c0_9, %c0_10] : memref<8x128xf32, #tpu.memory_space<vmem>>, vector<8x128xf32>
    tpu.vector_store %arg2[%c0_9, %c0_10], %16 {strides = array<i32>} : memref<8x128xf32, #tpu.memory_space<vmem>>, vector<8x128xf32>,
    return
  }
}

</mosaic_0001>

<llo_original>
// kernel: cnn_text_forward.1
$region0: #{cnn_text_forward.1}
  #allocation0 [shape = 'u32[]', space=smem, size = 0x4, offset = 0x4, fixed_abs, tag = 'smem constant byte address 0x4 - core index']
  #allocation1 [shape = 'u32[144,128]{1,0:T(1,128)}', space=vmem, size = 0x12000, scoped, tag = 'internal scratch']
  %s0 = inlined_call_operand.vmem [shape: bf16[32,160], index: 0, kind: input, shape index: {}]
  %s1 = inlined_call_operand.vmem [shape: bf16[304,128], index: 1, kind: input, shape index: {}]
  %s2 = inlined_call_operand.vmem [shape: f32[8,128], index: 2, kind: output, shape index: {}]
  %s3 = sld [smem:[#allocation0]]
  $region18: #{cnn_text_forward.1} parent=0
    _
  %s5 = ssub.s32 1, %s3
  %s6 = scalar_select 0, %s5, %s3
  // Predicated region
  $region2: #{cnn_text_forward.1} parent=0 // pred_check
    _
  $region3: #{cnn_text_forward.1} parent=0 // pred_check_branch
    %8 = sbr.rel (0) target = $region5
  $region4: #{cnn_text_forward.1} parent=0 // pred_region
    _
  $region5: #{cnn_text_forward.1} parent=0 // pred_fallthru
    _
  // Predicated region
  $region6: #{cnn_text_forward.1} parent=0 // pred_check
    _
  $region7: #{cnn_text_forward.1} parent=0 // pred_check_branch
    %10 = sbr.rel (0) target = $region9
  $region8: #{cnn_text_forward.1} parent=0 // pred_region
    _
  $region9: #{cnn_text_forward.1} parent=0 // pred_fallthru
    _
  %v12 = vld [vmem:[%s1] sm:$0xf]
  %v13 = vld [vmem:[%s1 + $0x4] sm:$0xf]
  %v14 = vld [vmem:[%s1 + $0x8] sm:$0xf]
  %v15 = vld [vmem:[%s1 + $0xc] sm:$0xf]
  %v16 = vld [vmem:[%s1 + $0x10] sm:$0xf]
  %v17 = vld [vmem:[%s1 + $0x14] sm:$0xf]
  %v18 = vld [vmem:[%s1 + $0x18] sm:$0xf]
  %v19 = vld [vmem:[%s1 + $0x1c] sm:$0xf]
  %v20 = vld [vmem:[%s1 + $0x20] sm:$0xf]
  %v21 = vld [vmem:[%s1 + $0x24] sm:$0xf]
  %v22 = vld [vmem:[%s1 + $0x28] sm:$0xf]
  %v23 = vld [vmem:[%s1 + $0x2c] sm:$0xf]
  %v24 = vld [vmem:[%s1 + $0x30] sm:$0xf]
  %v25 = vld [vmem:[%s1 + $0x34] sm:$0xf]
  %v26 = vld [vmem:[%s1 + $0x38] sm:$0xf]
  %v27 = vld [vmem:[%s1 + $0x3c] sm:$0xf]
  %v28 = vld [vmem:[%s1 + $0x40] sm:$0xf]
  %v29 = vld [vmem:[%s1 + $0x44] sm:$0xf]
  %v30 = vld [vmem:[%s1 + $0x48] sm:$0xf]
  %v31 = vld [vmem:[%s1 + $0x4c] sm:$0xf]
  %v32 = vld [vmem:[%s1 + $0x50] sm:$0xf]
  %v33 = vld [vmem:[%s1 + $0x54] sm:$0xf]
  %v34 = vld [vmem:[%s1 + $0x58] sm:$0xf]
  %v35 = vld [vmem:[%s1 + $0x5c] sm:$0xf]
  %v36 = vld [vmem:[%s1 + $0x60] sm:$0xf]
  %v37 = vld [vmem:[%s1 + $0x64] sm:$0xf]
  %v38 = vld [vmem:[%s1 + $0x68] sm:$0xf]
  %v39 = vld [vmem:[%s1 + $0x6c] sm:$0xf]
  %v40 = vld [vmem:[%s1 + $0x70] sm:$0xf]
  %v41 = vld [vmem:[%s1 + $0x74] sm:$0xf]
  %v42 = vld [vmem:[%s1 + $0x78] sm:$0xf]
  %v43 = vld [vmem:[%s1 + $0x7c] sm:$0xf]
  %v44 = vld [vmem:[%s1 + $0x80] sm:$0xf]
  %v45 = vld [vmem:[%s1 + $0x84] sm:$0xf]
  %v46 = vld [vmem:[%s1 + $0x88] sm:$0xf]
  %v47 = vld [vmem:[%s1 + $0x8c] sm:$0xf]
  %v48 = vld [vmem:[%s1 + $0x90] sm:$0xf]
  %v49 = vld [vmem:[%s1 + $0x94] sm:$0xf]
  %v50 = vunpack.c.l.bf16 %v48
  %v51 = vunpack.c.l.bf16 %v49
  %v52 = vld [vmem:[%s0] sm:$0xff]
  %v53 = vld [vmem:[%s0 + $0x8] sm:$0xff]
  %v54 = vld [vmem:[%s0 + $0x10] sm:$0xff]
  %v55 = vld [vmem:[%s0 + $0x18] sm:$0xff]
  %v60 = vunpack.c.l.b16 %v52
  %v61 = vunpack.c.h.b16 %v52
  %v62 = vunpack.c.l.b16 %v53
  %v63 = vunpack.c.h.b16 %v53
  %v64 = vunpack.c.l.b16 %v54
  %v65 = vunpack.c.h.b16 %v54
  %v66 = vunpack.c.l.b16 %v55
  %v67 = vunpack.c.h.b16 %v55
  %v68 = vpack.c.b16 %v62, %v60
  %v69 = vpack.c.b16 %v63, %v61
  %v70 = vpack.c.b16 %v66, %v64
  %v71 = vpack.c.b16 %v67, %v65
  %v94 = vunpack.c.l.b16 %v12
  %v95 = vunpack.c.l.b16 %v13
  %v96 = vunpack.c.l.b16 %v14
  %v97 = vunpack.c.l.b16 %v15
  %v98 = vunpack.c.l.b16 %v16
  %v99 = vunpack.c.l.b16 %v17
  %v100 = vunpack.c.l.b16 %v18
  %v101 = vunpack.c.l.b16 %v19
  %v102 = vunpack.c.l.b16 %v20
  %v103 = vunpack.c.l.b16 %v21
  %v104 = vunpack.c.l.b16 %v22
  %v105 = vunpack.c.l.b16 %v23
  %v106 = vunpack.c.l.b16 %v24
  %v107 = vunpack.c.l.b16 %v25
  %v108 = vunpack.c.l.b16 %v26
  %v109 = vunpack.c.l.b16 %v27
  %v110 = vunpack.c.l.b16 %v28
  %v111 = vunpack.c.l.b16 %v29
  %v112 = vunpack.c.l.b16 %v30
  %v113 = vunpack.c.l.b16 %v31
  %v114 = vpack.c.b16 %v95, %v94
  %v115 = vpack.c.b16 %v97, %v96
  %v116 = vpack.c.b16 %v99, %v98
  %v117 = vpack.c.b16 %v101, %v100
  %v118 = vpack.c.b16 %v103, %v102
  %v119 = vpack.c.b16 %v105, %v104
  %v120 = vpack.c.b16 %v107, %v106
  %v121 = vpack.c.b16 %v109, %v108
  %v122 = vpack.c.b16 %v111, %v110
  %v123 = vpack.c.b16 %v113, %v112
  %vm134 = vcmask 261120
  %v136 = vsel %vm134, %v69, 0
  %v139 = vsel %vm134, %v71, 0
  %141 = vmatprep.subr.bf16.mxu0 0
  %142 = vmatpush1.bf16.msra.mxu0 %v121
  %143 = vmatprep.subr.bf16.mxu0 0
  %144 = vmatpush1.bf16.msra.mxu0 %v120
  %145 = vmatprep.subr.bf16.mxu0 0
  %146 = vmatpush1.bf16.msra.mxu0 %v119
  %147 = vmatprep.subr.bf16.mxu0 0
  %148 = vmatpush1.bf16.msra.mxu0 %v118
  %149 = vmatprep.subr.bf16.mxu0 0
  %150 = vmatpush1.bf16.msra.mxu0 %v117
  %151 = vmatprep.subr.bf16.mxu0 0
  %152 = vmatpush1.bf16.msra.mxu0 %v116
  %153 = vmatprep.subr.bf16.mxu0 0
  %154 = vmatpush1.bf16.msra.mxu0 %v115
  %155 = vmatprep.subr.bf16.mxu0 0
  %156 = vmatpush1.bf16.msra.mxu0 %v114
  %157 = vmatprep.subr.bf16.mxu0 0
  %158 = vmatpush2.bf16.msra.mxu0 0
  %159 = vmatprep.subr.bf16.mxu0 0
  %160 = vmatpush2.bf16.msra.mxu0 0
  %161 = vmatprep.subr.bf16.mxu0 0
  %162 = vmatpush2.bf16.msra.mxu0 0
  %163 = vmatprep.subr.bf16.mxu0 0
  %164 = vmatpush2.bf16.msra.mxu0 0
  %165 = vmatprep.subr.bf16.mxu0 0
  %166 = vmatpush2.bf16.msra.mxu0 0
  %167 = vmatprep.subr.bf16.mxu0 0
  %168 = vmatpush2.bf16.msra.mxu0 0
  %169 = vmatprep.subr.bf16.mxu0 0
  %170 = vmatpush2.bf16.msra.mxu0 %v123
  %171 = vmatprep.subr.bf16.mxu0 0
  %172 = vmatpush2.bf16.msra.mxu0 %v122
  %173 = vmatprep.mubr.bf16.mxu0 %v136
  %174 = vmatmul.mubr.bf16.gmra.mxu0 %v68
  %v175 = vpop.f32.mrf.mxu0
  %v176 = vadd.f32 0.0, %v175
  %v177 = vpop.f32.mrf.mxu0
  %v178 = vpop.f32.mrf.mxu0
  %v179 = vadd.f32 0.0, %v178
  %v180 = vpop.f32.mrf.mxu0
  %181 = vmatprep.mubr.bf16.mxu0 %v139
  %182 = vmatmul.mubr.bf16.gmra.mxu0 %v70
  %v183 = vpop.f32.mrf.mxu0
  %v184 = vadd.f32 0.0, %v183
  %v185 = vpop.f32.mrf.mxu0
  %v186 = vpop.f32.mrf.mxu0
  %v187 = vadd.f32 0.0, %v186
  %v188 = vpop.f32.mrf.mxu0
  %189 = vdwg.mxu0
  %v190 = vadd.f32 %v176, %v50
  %v191 = vadd.f32 %v179, %v51
  %v192 = vadd.f32 %v184, %v50
  %v193 = vadd.f32 %v187, %v51
  %v194 = vmax.f32 %v190, 0.0
  %v195 = vmax.f32 %v191, 0.0
  %v196 = vmax.f32 %v192, 0.0
  %v197 = vmax.f32 %v193, 0.0
  %v198 = vmax.f32 %v194, %v195
  %v199 = vrot.slane %v198, 4
  %v200 = vmax.f32 %v198, %v199
  %v201 = vrot.slane %v200, 2
  %v202 = vmax.f32 %v200, %v201
  %v203 = vrot.slane %v202, 1
  %v204 = vmax.f32 %v202, %v203
  %v205 = vmax.f32 %v196, %v197
  %v206 = vrot.slane %v205, 4
  %v207 = vmax.f32 %v205, %v206
  %v208 = vrot.slane %v207, 2
  %v209 = vmax.f32 %v207, %v208
  %v210 = vrot.slane %v209, 1
  %v211 = vmax.f32 %v209, %v210
  %vm214 = vcmask 1041409
  %v215 = vsel %vm214, %v211, %v204
  %vm217 = vcmask 1041408
  %v218 = vsel %vm217, %v215, 0.0
  %v219 = vpack.c.bf16 %v218, %v218
  %v236 = vunpack.c.l.b16 %v32
  %v237 = vunpack.c.l.b16 %v33
  %v238 = vunpack.c.l.b16 %v34
  %v239 = vunpack.c.l.b16 %v35
  %v240 = vunpack.c.l.b16 %v36
  %v241 = vunpack.c.l.b16 %v37
  %v242 = vunpack.c.l.b16 %v38
  %v243 = vunpack.c.l.b16 %v39
  %v244 = vunpack.c.l.b16 %v40
  %v245 = vunpack.c.l.b16 %v41
  %v246 = vunpack.c.l.b16 %v42
  %v247 = vunpack.c.l.b16 %v43
  %v248 = vunpack.c.l.b16 %v44
  %v249 = vunpack.c.l.b16 %v45
  %v250 = vunpack.c.l.b16 %v46
  %v251 = vunpack.c.l.b16 %v47
  %v252 = vpack.c.b16 %v237, %v236
  %v253 = vpack.c.b16 %v239, %v238
  %v254 = vpack.c.b16 %v241, %v240
  %v255 = vpack.c.b16 %v243, %v242
  %v256 = vpack.c.b16 %v245, %v244
  %v257 = vpack.c.b16 %v247, %v246
  %v258 = vpack.c.b16 %v249, %v248
  %v259 = vpack.c.b16 %v251, %v250
  %268 = vmatprep.subr.bf16.mxu0 0
  %269 = vmatpush1.bf16.msra.mxu0 %v259
  %270 = vmatprep.subr.bf16.mxu0 0
  %271 = vmatpush1.bf16.msra.mxu0 %v258
  %272 = vmatprep.subr.bf16.mxu0 0
  %273 = vmatpush1.bf16.msra.mxu0 %v257
  %274 = vmatprep.subr.bf16.mxu0 0
  %275 = vmatpush1.bf16.msra.mxu0 %v256
  %276 = vmatprep.subr.bf16.mxu0 0
  %277 = vmatpush1.bf16.msra.mxu0 %v255
  %278 = vmatprep.subr.bf16.mxu0 0
  %279 = vmatpush1.bf16.msra.mxu0 %v254
  %280 = vmatprep.subr.bf16.mxu0 0
  %281 = vmatpush1.bf16.msra.mxu0 %v253
  %282 = vmatprep.subr.bf16.mxu0 0
  %283 = vmatpush1.bf16.msra.mxu0 %v252
  %284 = vmatprep.subr.bf16.mxu0 0
  %285 = vmatpush2.bf16.msra.mxu0 0
  %286 = vmatprep.subr.bf16.mxu0 0
  %287 = vmatpush2.bf16.msra.mxu0 0
  %288 = vmatprep.subr.bf16.mxu0 0
  %289 = vmatpush2.bf16.msra.mxu0 0
  %290 = vmatprep.subr.bf16.mxu0 0
  %291 = vmatpush2.bf16.msra.mxu0 0
  %292 = vmatprep.subr.bf16.mxu0 0
  %293 = vmatpush2.bf16.msra.mxu0 0
  %294 = vmatprep.subr.bf16.mxu0 0
  %295 = vmatpush2.bf16.msra.mxu0 0
  %296 = vmatprep.subr.bf16.mxu0 0
  %297 = vmatpush2.bf16.msra.mxu0 0
  %298 = vmatprep.subr.bf16.mxu0 0
  %299 = vmatpush2.bf16.msra.mxu0 0
  %300 = vmatprep.mubr.bf16.mxu0 0
  %301 = vmatmul.mubr.bf16.gmra.mxu0 %v219
  %v302 = vpop.f32.mrf.mxu0
  %v303 = vadd.f32 0.0, %v302
  %v304 = vpop.f32.mrf.mxu0
  %v305 = vpop.f32.mrf.mxu0
  %v306 = vpop.f32.mrf.mxu0
  %307 = vdwg.mxu0
  %308 = vst [vmem:[%s2] sm:$0xff] %v303
  // Predicated region
  $region10: #{cnn_text_forward.1} parent=0 // pred_check
    _
  $region11: #{cnn_text_forward.1} parent=0 // pred_check_branch
    %310 = sbr.rel (0) target = $region13
  $region12: #{cnn_text_forward.1} parent=0 // pred_region
    _
  $region13: #{cnn_text_forward.1} parent=0 // pred_fallthru
    _
  // Predicated region
  $region14: #{cnn_text_forward.1} parent=0 // pred_check
    _
  $region15: #{cnn_text_forward.1} parent=0 // pred_check_branch
    %312 = sbr.rel (0) target = $region17
  $region16: #{cnn_text_forward.1} parent=0 // pred_region
    _
  $region17: #{cnn_text_forward.1} parent=0 // pred_fallthru
    _

</llo_original>
